<compile_context>
chip_gen: v7x
topology: tpu7x:2x2x1
jax: 0.10.0
libtpu: 0.0.40
codegen_flags: <defaults>
</compile_context>

<pallas_src>
import jax
import jax.numpy as jnp
from jax import lax
from jax.experimental import pallas as pl
from jax.experimental.pallas import tpu as pltpu


def gnn_layer_kernel(a_ref, x_ref, ina_ref, w0_ref, w1_ref, xout_ref, pen_ref):
    A = a_ref[...]            # (N, N)   raw learnable adjacency
    x = x_ref[...]            # (N, Din)
    in_A = ina_ref[...]       # (N, N)
    w0 = w0_ref[...]          # (Dout, Din)  PyTorch layout
    w1 = w1_ref[...]          # (Dout, Dout)

    N = A.shape[0]
    Din = x.shape[1]

    # ---- Search_A: symmetrize ----
    out_A = A + A.T                                                   # (N, N)

    # ---- forward stage-1 aggregation (reused by the GLR penalty) ----
    h0 = jnp.dot(out_A, x, preferred_element_type=jnp.float32)        # (N, Din)

    # ---- regularization penalties ----
    # GLR: only the diagonal of x.T @ (I_N - out_A) @ x survives the I_d mask;
    # diag[j] = sum_i x[i, j] * (x - out_A @ x)[i, j].  mean is over Din*Din.
    diag = jnp.sum(x * (x - h0), axis=0, keepdims=True)               # (1, Din)
    GLR = jnp.sum(diag * diag) / float(Din * Din)

    sparsity = jnp.sum(jnp.abs(out_A)) / float(N * N)

    row_sum = jnp.sum(out_A, axis=-1, keepdims=True)                  # (N, 1)
    properties = jnp.sum((row_sum - 1.0) ** 2) / float(N)

    ina_row = jnp.sum(in_A, axis=-1, keepdims=True)                   # (N, 1)
    in_A_norm = in_A * pl.reciprocal(ina_row, approx=True)            # EUP slot
    gt = jnp.sum((out_A - in_A_norm) ** 2) / float(N * N)

    # scalar penalties ride the SMEM/scalar path; order matches the PyTorch
    # list: [GLR, sparsity, properties, gt].
    pen_ref[0] = GLR
    pen_ref[1] = sparsity
    pen_ref[2] = properties
    pen_ref[3] = gt

    # ---- GNN forward: two (adjacency @ x) @ W.T + LeakyReLU(0.1) stages ----
    nt = (((1,), (1,)), ((), ()))   # contract act last dim with weight last dim (== @ W.T)
    h = lax.dot_general(h0, w0, nt, preferred_element_type=jnp.float32)   # (N, Dout)
    h = jnp.where(h > 0, h, 0.1 * h)
    h = jnp.dot(out_A, h, preferred_element_type=jnp.float32)             # (N, Dout)
    h = lax.dot_general(h, w1, nt, preferred_element_type=jnp.float32)    # (N, Dout)
    h = jnp.where(h > 0, h, 0.1 * h)
    xout_ref[...] = h


def gnn_layer(A, x, in_A, W0, W1):
    N, Din = x.shape
    Dout = W0.shape[0]

    def full_spec(shape):
        return pl.BlockSpec(shape, lambda: (0,) * len(shape))

    x_out, pen = pl.pallas_call(
        gnn_layer_kernel,
        out_shape=(
            jax.ShapeDtypeStruct((N, Dout), jnp.float32),
            jax.ShapeDtypeStruct((4,), jnp.float32),
        ),
        in_specs=[
            full_spec(A.shape),
            full_spec(x.shape),
            full_spec(in_A.shape),
            full_spec(W0.shape),
            full_spec(W1.shape),
        ],
        out_specs=(
            full_spec((N, Dout)),
            pl.BlockSpec(memory_space=pltpu.MemorySpace.SMEM),
        ),
    )(A, x, in_A, W0, W1)
    # penalty_term order matches PyTorch: [GLR, sparsity, properties, gt]
    return x_out, pen


def gnn_layer_ref(A, x, in_A, W0, W1):
    """Pure-JAX reference mirroring the PyTorch module exactly."""
    N, Din = x.shape
    out_A = A + A.T
    I_N = jnp.eye(N, dtype=jnp.float32)
    I_d = jnp.eye(Din, dtype=jnp.float32)
    GLR = jnp.mean(((x.T @ (I_N - out_A) @ x) * I_d) ** 2)
    sparsity = jnp.mean(jnp.abs(out_A))
    properties = jnp.mean((jnp.sum(out_A, -1) - 1.0) ** 2)
    in_A_n = in_A / jnp.sum(in_A, -1, keepdims=True)
    gt = jnp.mean((out_A - in_A_n) ** 2)
    h = (out_A @ x) @ W0.T
    h = jnp.where(h > 0, h, 0.1 * h)
    h = (out_A @ h) @ W1.T
    h = jnp.where(h > 0, h, 0.1 * h)
    return h, jnp.stack([GLR, sparsity, properties, gt])


if __name__ == "__main__":
    nodesize = 16      # N
    input_dim = 8      # Din
    output_dim = 16    # Dout

    key = jax.random.PRNGKey(0)
    k_a, k_w0, k_w1, k_x, k_ina = jax.random.split(key, 5)

    # Search_A parameter: xavier_uniform_ on (N, N)
    bound_a = (6.0 / (nodesize + nodesize)) ** 0.5
    A = jax.random.uniform(k_a, (nodesize, nodesize), jnp.float32,
                           minval=-bound_a, maxval=bound_a)
    # Linear weights (PyTorch layout: (out_features, in_features))
    bound0 = (1.0 / input_dim) ** 0.5
    W0 = jax.random.uniform(k_w0, (output_dim, input_dim), jnp.float32,
                            minval=-bound0, maxval=bound0)
    bound1 = (1.0 / output_dim) ** 0.5
    W1 = jax.random.uniform(k_w1, (output_dim, output_dim), jnp.float32,
                            minval=-bound1, maxval=bound1)

    # inputs (in_A strictly positive so row-sums are safe to invert)
    x = jax.random.normal(k_x, (nodesize, input_dim), jnp.float32)
    in_A = jax.random.uniform(k_ina, (nodesize, nodesize), jnp.float32,
                              minval=0.1, maxval=1.0)

    out_x, penalties = gnn_layer(A, x, in_A, W0, W1)
    out_x = jax.block_until_ready(out_x)
    penalties = jax.block_until_ready(penalties)

    ref_x, ref_pen = gnn_layer_ref(A, x, in_A, W0, W1)
    assert jnp.allclose(out_x, ref_x, atol=1e-4, rtol=1e-4), "forward mismatch"
    assert jnp.allclose(penalties, ref_pen, atol=1e-3, rtol=1e-3), "penalty mismatch"

    print("KERNEL_OK")
</pallas_src>

<mosaic_0001>
module attributes {stable_mosaic.version = 11 : i64} {
  func.func @gnn_layer_kernel(%arg0: memref<16x16xf32, #tpu.memory_space<vmem>>, %arg1: memref<16x8xf32, #tpu.memory_space<vmem>>, %arg2: memref<16x16xf32, #tpu.memory_space<vmem>>, %arg3: memref<16x8xf32, #tpu.memory_space<vmem>>, %arg4: memref<16x16xf32, #tpu.memory_space<vmem>>, %arg5: memref<16x16xf32, #tpu.memory_space<vmem>>, %arg6: memref<4xf32, #tpu.memory_space<smem>>) attributes {dimension_semantics = [], scalar_prefetch = 0 : i64, scratch_operands = 0 : i64, tpu.core_type = #tpu.core_type<tc>} {
    %c0 = arith.constant 0 : index
    %c0_0 = arith.constant 0 : index
    %0 = vector.load %arg0[%c0, %c0_0] : memref<16x16xf32, #tpu.memory_space<vmem>>, vector<16x16xf32>
    %c0_1 = arith.constant 0 : index
    %c0_2 = arith.constant 0 : index
    %1 = vector.load %arg1[%c0_1, %c0_2] : memref<16x8xf32, #tpu.memory_space<vmem>>, vector<16x8xf32>
    %c0_3 = arith.constant 0 : index
    %c0_4 = arith.constant 0 : index
    %2 = vector.load %arg2[%c0_3, %c0_4] : memref<16x16xf32, #tpu.memory_space<vmem>>, vector<16x16xf32>
    %c0_5 = arith.constant 0 : index
    %c0_6 = arith.constant 0 : index
    %3 = vector.load %arg3[%c0_5, %c0_6] : memref<16x8xf32, #tpu.memory_space<vmem>>, vector<16x8xf32>
    %c0_7 = arith.constant 0 : index
    %c0_8 = arith.constant 0 : index
    %4 = vector.load %arg4[%c0_7, %c0_8] : memref<16x16xf32, #tpu.memory_space<vmem>>, vector<16x16xf32>
    %5 = tpu.transpose %0, [1, 0] : vector<16x16xf32> -> vector<16x16xf32>
    %6 = arith.addf %0, %5 : vector<16x16xf32>
    %cst = arith.constant dense<0.000000e+00> : vector<16x8xf32>
    %7 = tpu.matmul %6, %1, %cst {dimension_numbers = #tpu.dot_dimension_numbers<[1], [0], [0], [1], [0, 0, 1, 1], [], []>} : vector<16x16xf32>, vector<16x8xf32>, vector<16x8xf32> -> vector<16x8xf32>
    %8 = arith.subf %1, %7 : vector<16x8xf32>
    %9 = arith.mulf %1, %8 : vector<16x8xf32>
    %cst_9 = arith.constant dense<0.000000e+00> : vector<8xf32>
    %10 = vector.multi_reduction <add>, %9, %cst_9 [0] : vector<16x8xf32> to vector<8xf32>
    %11 = vector.shape_cast %10 : vector<8xf32> to vector<1x8xf32>
    %12 = arith.mulf %11, %11 : vector<1x8xf32>
    %13 = vector.shape_cast %12 : vector<1x8xf32> to vector<1x1x8xf32>
    %cst_10 = arith.constant dense<0.000000e+00> : vector<1xf32>
    %14 = vector.multi_reduction <add>, %13, %cst_10 [1, 2] : vector<1x1x8xf32> to vector<1xf32>
    %15 = vector.shape_cast %14 : vector<1xf32> to vector<1x1x1xf32>
    %16 = vector.extract %15[0, 0, 0] : f32 from vector<1x1x1xf32>
    %cst_11 = arith.constant 6.400000e+01 : f32
    %17 = arith.divf %16, %cst_11 : f32
    %18 = math.absf %6 : vector<16x16xf32>
    %19 = vector.shape_cast %18 : vector<16x16xf32> to vector<1x16x16xf32>
    %cst_12 = arith.constant dense<0.000000e+00> : vector<1xf32>
    %20 = vector.multi_reduction <add>, %19, %cst_12 [1, 2] : vector<1x16x16xf32> to vector<1xf32>
    %21 = vector.shape_cast %20 : vector<1xf32> to vector<1x1x1xf32>
    %22 = vector.extract %21[0, 0, 0] : f32 from vector<1x1x1xf32>
    %cst_13 = arith.constant 2.560000e+02 : f32
    %23 = arith.divf %22, %cst_13 : f32
    %cst_14 = arith.constant dense<0.000000e+00> : vector<16xf32>
    %24 = vector.multi_reduction <add>, %6, %cst_14 [1] : vector<16x16xf32> to vector<16xf32>
    %25 = vector.shape_cast %24 : vector<16xf32> to vector<16x1xf32>
    %cst_15 = arith.constant 1.000000e+00 : f32
    %26 = vector.broadcast %cst_15 : f32 to vector<16x1xf32>
    %27 = arith.subf %25, %26 : vector<16x1xf32>
    %28 = arith.mulf %27, %27 : vector<16x1xf32>
    %29 = vector.shape_cast %28 : vector<16x1xf32> to vector<1x16x1xf32>
    %cst_16 = arith.constant dense<0.000000e+00> : vector<1xf32>
    %30 = vector.multi_reduction <add>, %29, %cst_16 [1, 2] : vector<1x16x1xf32> to vector<1xf32>
    %31 = vector.shape_cast %30 : vector<1xf32> to vector<1x1x1xf32>
    %32 = vector.extract %31[0, 0, 0] : f32 from vector<1x1x1xf32>
    %cst_17 = arith.constant 1.600000e+01 : f32
    %33 = arith.divf %32, %cst_17 : f32
    %cst_18 = arith.constant dense<0.000000e+00> : vector<16xf32>
    %34 = vector.multi_reduction <add>, %2, %cst_18 [1] : vector<16x16xf32> to vector<16xf32>
    %35 = vector.shape_cast %34 : vector<16xf32> to vector<16x1xf32>
    %36 = tpu.reciprocal %35 {approx = true} : vector<16x1xf32> -> vector<16x1xf32>
    %37 = vector.broadcast %36 : vector<16x1xf32> to vector<16x16xf32>
    %38 = arith.mulf %2, %37 : vector<16x16xf32>
    %39 = arith.subf %6, %38 : vector<16x16xf32>
    %40 = arith.mulf %39, %39 : vector<16x16xf32>
    %41 = vector.shape_cast %40 : vector<16x16xf32> to vector<1x16x16xf32>
    %cst_19 = arith.constant dense<0.000000e+00> : vector<1xf32>
    %42 = vector.multi_reduction <add>, %41, %cst_19 [1, 2] : vector<1x16x16xf32> to vector<1xf32>
    %43 = vector.shape_cast %42 : vector<1xf32> to vector<1x1x1xf32>
    %44 = vector.extract %43[0, 0, 0] : f32 from vector<1x1x1xf32>
    %cst_20 = arith.constant 2.560000e+02 : f32
    %45 = arith.divf %44, %cst_20 : f32
    %c0_21 = arith.constant 0 : index
    %46 = memref.load %arg6[%c0_21] : memref<4xf32, #tpu.memory_space<smem>>
    memref.store %17, %arg6[%c0_21] : memref<4xf32, #tpu.memory_space<smem>>
    %c1 = arith.constant 1 : index
    %47 = memref.load %arg6[%c1] : memref<4xf32, #tpu.memory_space<smem>>
    memref.store %23, %arg6[%c1] : memref<4xf32, #tpu.memory_space<smem>>
    %c2 = arith.constant 2 : index
    %48 = memref.load %arg6[%c2] : memref<4xf32, #tpu.memory_space<smem>>
    memref.store %33, %arg6[%c2] : memref<4xf32, #tpu.memory_space<smem>>
    %c3 = arith.constant 3 : index
    %49 = memref.load %arg6[%c3] : memref<4xf32, #tpu.memory_space<smem>>
    memref.store %45, %arg6[%c3] : memref<4xf32, #tpu.memory_space<smem>>
    %cst_22 = arith.constant dense<0.000000e+00> : vector<16x16xf32>
    %50 = tpu.matmul %7, %3, %cst_22 {dimension_numbers = #tpu.dot_dimension_numbers<[1], [1], [0], [0], [0, 0, 1, 0], [], []>} : vector<16x8xf32>, vector<16x8xf32>, vector<16x16xf32> -> vector<16x16xf32>
    %cst_23 = arith.constant 0.000000e+00 : f32
    %51 = vector.broadcast %cst_23 : f32 to vector<16x16xf32>
    %52 = arith.cmpf ogt, %50, %51 : vector<16x16xf32>
    %cst_24 = arith.constant 1.000000e-01 : f32
    %53 = vector.broadcast %cst_24 : f32 to vector<16x16xf32>
    %54 = arith.mulf %53, %50 : vector<16x16xf32>
    %55 = arith.select %52, %50, %54 : vector<16x16xi1>, vector<16x16xf32>
    %cst_25 = arith.constant dense<0.000000e+00> : vector<16x16xf32>
    %56 = tpu.matmul %6, %55, %cst_25 {dimension_numbers = #tpu.dot_dimension_numbers<[1], [0], [0], [1], [0, 0, 1, 1], [], []>} : vector<16x16xf32>, vector<16x16xf32>, vector<16x16xf32> -> vector<16x16xf32>
    %cst_26 = arith.constant dense<0.000000e+00> : vector<16x16xf32>
    %57 = tpu.matmul %56, %4, %cst_26 {dimension_numbers = #tpu.dot_dimension_numbers<[1], [1], [0], [0], [0, 0, 1, 0], [], []>} : vector<16x16xf32>, vector<16x16xf32>, vector<16x16xf32> -> vector<16x16xf32>
    %cst_27 = arith.constant 0.000000e+00 : f32
    %58 = vector.broadcast %cst_27 : f32 to vector<16x16xf32>
    %59 = arith.cmpf ogt, %57, %58 : vector<16x16xf32>
    %cst_28 = arith.constant 1.000000e-01 : f32
    %60 = vector.broadcast %cst_28 : f32 to vector<16x16xf32>
    %61 = arith.mulf %60, %57 : vector<16x16xf32>
    %62 = arith.select %59, %57, %61 : vector<16x16xi1>, vector<16x16xf32>
    %c0_29 = arith.constant 0 : index
    %c0_30 = arith.constant 0 : index
    %63 = vector.load %arg5[%c0_29, %c0_30] : memref<16x16xf32, #tpu.memory_space<vmem>>, vector<16x16xf32>
    tpu.vector_store %arg5[%c0_29, %c0_30], %62 {strides = array<i32>} : memref<16x16xf32, #tpu.memory_space<vmem>>, vector<16x16xf32>,
    return
  }
}

</mosaic_0001>

<llo_original>
// kernel: tpu_custom_call.1
$region0: #{tpu_custom_call.1}
  #allocation0 [shape = 'u32[]', space=smem, size = 0x4, offset = 0x4, fixed_abs, tag = 'smem constant byte address 0x4 - core index']
  #allocation1 [shape = 'u32[144,128]{1,0:T(1,128)}', space=vmem, size = 0x12000, scoped, tag = 'internal scratch']
  %s0 = inlined_call_operand.vmem [shape: f32[16,16], index: 0, kind: input, shape index: {}]
  %s1 = inlined_call_operand.vmem [shape: f32[16,8], index: 1, kind: input, shape index: {}]
  %s2 = inlined_call_operand.vmem [shape: f32[16,16], index: 2, kind: input, shape index: {}]
  %s3 = inlined_call_operand.vmem [shape: f32[16,8], index: 3, kind: input, shape index: {}]
  %s4 = inlined_call_operand.vmem [shape: f32[16,16], index: 4, kind: input, shape index: {}]
  %s5 = inlined_call_operand.hbm [shape: f32[16,16], index: 5, kind: output, shape index: {0}]
  %s6 = inlined_call_operand.hbm [shape: f32[4], index: 6, kind: output, shape index: {1}]
  %7 = xla_tuple %s5, %s6
  %s8 = sld [smem:[#allocation0]]
  $region38: #{tpu_custom_call.1} parent=0
    _
  %s10 = ssub.s32 1, %s8
  %s11 = scalar_select 0, %s10, %s8
  $region1: #{tpu_custom_call.1} parent=0
    #allocation2 [shape = 'u8[8192]{0}', space=vmem, size = 0x2000, scoped, tag = 'output window, operand 0, single buffered']
    #allocation3 [shape = 's32[1]{0}', space=sflag, size = 0x4, scoped, tag = 'scoped memory for tpu_custom_call.1']
    #allocation4 [shape = 's32[1]{0}', space=sflag, size = 0x4, scoped, tag = 'scoped memory for tpu_custom_call.1']
    #allocation5 [shape = 'u8[512]{0}', space=smem, size = 0x200, scoped, tag = 'output window, operand 1, single buffered']
    %12 = vsyncpa [#allocation3], 0
    %13 = vsyncpa [#allocation4], 0
    // Predicated region
    $region2: #{tpu_custom_call.1} parent=1 // pred_check
      _
    $region3: #{tpu_custom_call.1} parent=1 // pred_check_branch
      %15 = sbr.rel (0) target = $region5
    $region4: #{tpu_custom_call.1} parent=1 // pred_region
      _
    $region5: #{tpu_custom_call.1} parent=1 // pred_fallthru
      _
    // Predicated region
    $region6: #{tpu_custom_call.1} parent=1 // pred_check
      _
    $region7: #{tpu_custom_call.1} parent=1 // pred_check_branch
      %17 = sbr.rel (0) target = $region9
    $region8: #{tpu_custom_call.1} parent=1 // pred_region
      _
    $region9: #{tpu_custom_call.1} parent=1 // pred_fallthru
      _
    // Predicated region
    $region10: #{tpu_custom_call.1} parent=1 // pred_check
      _
    $region11: #{tpu_custom_call.1} parent=1 // pred_check_branch
      %19 = sbr.rel (0) target = $region13
    $region12: #{tpu_custom_call.1} parent=1 // pred_region
      _
    $region13: #{tpu_custom_call.1} parent=1 // pred_fallthru
      _
    // Predicated region
    $region14: #{tpu_custom_call.1} parent=1 // pred_check
      _
    $region15: #{tpu_custom_call.1} parent=1 // pred_check_branch
      %21 = sbr.rel (0) target = $region17
    $region16: #{tpu_custom_call.1} parent=1 // pred_region
      _
    $region17: #{tpu_custom_call.1} parent=1 // pred_fallthru
      _
    // Predicated region
    $region18: #{tpu_custom_call.1} parent=1 // pred_check
      _
    $region19: #{tpu_custom_call.1} parent=1 // pred_check_branch
      %23 = sbr.rel (0) target = $region21
    $region20: #{tpu_custom_call.1} parent=1 // pred_region
      _
    $region21: #{tpu_custom_call.1} parent=1 // pred_fallthru
      _
    %v24 = vld [vmem:[%s0] sm:$0xff]
    %v25 = vld [vmem:[%s0 + $0x8] sm:$0xff]
    %v26 = vld [vmem:[%s1] sm:$0xff]
    %v27 = vld [vmem:[%s1 + $0x8] sm:$0xff]
    %v28 = vld [vmem:[%s2] sm:$0xff]
    %v29 = vld [vmem:[%s2 + $0x8] sm:$0xff]
    %v30 = vld [vmem:[%s3] sm:$0xff]
    %v31 = vld [vmem:[%s3 + $0x8] sm:$0xff]
    %v32 = vld [vmem:[%s4] sm:$0xff]
    %v33 = vld [vmem:[%s4 + $0x8] sm:$0xff]
    %34 = vxpose.xlu0.b32.start [1/16] %v24, 128
    %35 = vxpose.xlu0.b32.cont [2/16] %v25, 128
    %36 = vxpose.xlu0.b32.cont [3/16] 0.0, 128
    %37 = vxpose.xlu0.b32.cont [4/16] 0.0, 128
    %38 = vxpose.xlu0.b32.cont [5/16] 0.0, 128
    %39 = vxpose.xlu0.b32.cont [6/16] 0.0, 128
    %40 = vxpose.xlu0.b32.cont [7/16] 0.0, 128
    %41 = vxpose.xlu0.b32.cont [8/16] 0.0, 128
    %42 = vxpose.xlu0.b32.cont [9/16] 0.0, 128
    %43 = vxpose.xlu0.b32.cont [10/16] 0.0, 128
    %44 = vxpose.xlu0.b32.cont [11/16] 0.0, 128
    %45 = vxpose.xlu0.b32.cont [12/16] 0.0, 128
    %46 = vxpose.xlu0.b32.cont [13/16] 0.0, 128
    %47 = vxpose.xlu0.b32.cont [14/16] 0.0, 128
    %48 = vxpose.xlu0.b32.cont [15/16] 0.0, 128
    %49 = vxpose.xlu0.b32.end [16/16] 0.0, 128
    %v50 = vpop.trf.xlu0
    %v51 = vpop.trf.xlu0
    %v52 = vpop.trf.xlu0
    %v53 = vpop.trf.xlu0
    %v54 = vpop.trf.xlu0
    %v55 = vpop.trf.xlu0
    %v56 = vpop.trf.xlu0
    %v57 = vpop.trf.xlu0
    %v58 = vpop.trf.xlu0
    %v59 = vpop.trf.xlu0
    %v60 = vpop.trf.xlu0
    %v61 = vpop.trf.xlu0
    %v62 = vpop.trf.xlu0
    %v63 = vpop.trf.xlu0
    %v64 = vpop.trf.xlu0
    %v65 = vpop.trf.xlu0
    %v66 = vadd.f32 %v24, %v50
    %v67 = vadd.f32 %v25, %v51
    %vm68 = vcmask 130048
    %v70 = vsel %vm68, %v66, 0
    %v73 = vsel %vm68, %v67, 0
    %75 = vmatprep.subr.mxu0 0.0
    %76 = vmatpush1.msra.mxu0 %v26
    %77 = vmatprep.subr.mxu0 0.0
    %78 = vmatpush1.msra.mxu0 %v27
    %79 = vmatprep.subr.mxu0 0.0
    %80 = vmatpush1.msra.mxu0 0.0
    %81 = vmatprep.subr.mxu0 0.0
    %82 = vmatpush1.msra.mxu0 0.0
    %83 = vmatprep.subr.mxu0 0.0
    %84 = vmatpush1.msra.mxu0 0.0
    %85 = vmatprep.subr.mxu0 0.0
    %86 = vmatpush1.msra.mxu0 0.0
    %87 = vmatprep.subr.mxu0 0.0
    %88 = vmatpush1.msra.mxu0 0.0
    %89 = vmatprep.subr.mxu0 0.0
    %90 = vmatpush1.msra.mxu0 0.0
    %91 = vmatprep.subr.mxu0 0.0
    %92 = vmatpush1.msra.mxu0 0.0
    %93 = vmatprep.subr.mxu0 0.0
    %94 = vmatpush1.msra.mxu0 0.0
    %95 = vmatprep.subr.mxu0 0.0
    %96 = vmatpush1.msra.mxu0 0.0
    %97 = vmatprep.subr.mxu0 0.0
    %98 = vmatpush1.msra.mxu0 0.0
    %99 = vmatprep.subr.mxu0 0.0
    %100 = vmatpush1.msra.mxu0 0.0
    %101 = vmatprep.subr.mxu0 0.0
    %102 = vmatpush1.msra.mxu0 0.0
    %103 = vmatprep.subr.mxu0 0.0
    %104 = vmatpush1.msra.mxu0 0.0
    %105 = vmatprep.subr.mxu0 0.0
    %106 = vmatpush1.msra.mxu0 0.0
    %107 = vmatprep.subr.mxu0 0.0
    %108 = vmatpush1.msra.mxu0 0.0
    %109 = vmatprep.subr.mxu0 0.0
    %110 = vmatpush1.msra.mxu0 0.0
    %111 = vmatprep.subr.mxu0 0.0
    %112 = vmatpush1.msra.mxu0 0.0
    %113 = vmatprep.subr.mxu0 0.0
    %114 = vmatpush1.msra.mxu0 0.0
    %115 = vmatprep.subr.mxu0 0.0
    %116 = vmatpush1.msra.mxu0 0.0
    %117 = vmatprep.subr.mxu0 0.0
    %118 = vmatpush1.msra.mxu0 0.0
    %119 = vmatprep.subr.mxu0 0.0
    %120 = vmatpush1.msra.mxu0 0.0
    %121 = vmatprep.subr.mxu0 0.0
    %122 = vmatpush1.msra.mxu0 0.0
    %123 = vmatprep.subr.mxu0 0.0
    %124 = vmatpush1.msra.mxu0 0.0
    %125 = vmatprep.subr.mxu0 0.0
    %126 = vmatpush1.msra.mxu0 0.0
    %127 = vmatprep.subr.mxu0 0.0
    %128 = vmatpush1.msra.mxu0 0.0
    %129 = vmatprep.subr.mxu0 0.0
    %130 = vmatpush1.msra.mxu0 0.0
    %131 = vmatprep.subr.mxu0 0.0
    %132 = vmatpush1.msra.mxu0 0.0
    %133 = vmatprep.subr.mxu0 0.0
    %134 = vmatpush1.msra.mxu0 0.0
    %135 = vmatprep.subr.mxu0 0.0
    %136 = vmatpush1.msra.mxu0 0.0
    %137 = vmatprep.subr.mxu0 0.0
    %138 = vmatpush1.msra.mxu0 0.0
    %139 = vmatprep.mubr.f32.mxu0 0.0
    %140 = vmatmul.mubr.f32.gmra.mrb[0].mxu0 %v70
    %v141 = vpop.f32.mrb[0].mxu0
    %v142 = vadd.f32 0.0, %v141
    %v143 = vpop.f32.mrb[0].mxu0
    %144 = vmatprep.mubr.f32.mxu0 0.0
    %145 = vmatmul.mubr.f32.gmra.mrb[0].mxu0 %v73
    %v146 = vpop.f32.mrb[0].mxu0
    %v147 = vadd.f32 0.0, %v146
    %v148 = vpop.f32.mrb[0].mxu0
    %149 = vdwg.mxu0
    %v150 = vsub.f32 %v26, %v142
    %v151 = vsub.f32 %v27, %v147
    %v152 = vmul.f32 %v26, %v150
    %v153 = vmul.f32 %v27, %v151
    %vm154 = vcmask 64512
    %v155 = vsel %vm154, %v152, 0.0
    %v156 = vsel %vm154, %v153, 0.0
    %v157 = vadd.f32 %v155, %v156
    %v158 = vrot.slane %v157, 4
    %v159 = vadd.f32 %v157, %v158
    %v160 = vrot.slane %v159, 2
    %v161 = vadd.f32 %v159, %v160
    %v162 = vrot.slane %v161, 1
    %v163 = vadd.f32 %v161, %v162
    %v164 = vmul.f32 %v163, %v163
    %vm165 = vcmask 57344
    %v166 = vsel %vm165, %v164, 0.0
    %167 = vadd.xlane.f32.xlu0 %v166
    %v168 = vpop.xlane.xlu0 %167
    %v169 = vrot.slane %v168, 4
    %v170 = vadd.f32 %v168, %v169
    %v171 = vrot.slane %v170, 2
    %v172 = vadd.f32 %v170, %v171
    %v173 = vrot.slane %v172, 1
    %v174 = vadd.f32 %v172, %v173
    %s175 = vtos %v174
    %v176 = vrcp.pop 64.0
    %s177 = vtos %v176
    %s178 = smul.f32 %s175, %s177
    %v179 = vand.u32 2147483647, %v66
    %v180 = vand.u32 2147483647, %v67
    %v181 = vsel %vm68, %v179, 0.0
    %v182 = vsel %vm68, %v180, 0.0
    %v183 = vadd.f32 %v181, %v182
    %184 = vadd.xlane.f32.xlu0 %v183
    %v185 = vpop.xlane.xlu0 %184
    %v186 = vrot.slane %v185, 4
    %v187 = vadd.f32 %v185, %v186
    %v188 = vrot.slane %v187, 2
    %v189 = vadd.f32 %v187, %v188
    %v190 = vrot.slane %v189, 1
    %v191 = vadd.f32 %v189, %v190
    %s192 = vtos %v191
    %v193 = vrcp.pop 256.0
    %s194 = vtos %v193
    %s195 = smul.f32 %s192, %s194
    %v196 = vsel %vm68, %v66, 0.0
    %197 = vadd.xlane.f32.xlu0 %v196
    %v198 = vpop.xlane.xlu0 %197
    %v199 = vsel %vm68, %v67, 0.0
    %200 = vadd.xlane.f32.xlu0 %v199
    %v201 = vpop.xlane.xlu0 %200
    %v202 = vsub.f32 %v198, 1.0
    %v203 = vsub.f32 %v201, 1.0
    %v204 = vmul.f32 %v202, %v202
    %v205 = vmul.f32 %v203, %v203
    %vm206 = vcmask 7168
    %v207 = vsel %vm206, %v204, 0.0
    %v208 = vsel %vm206, %v205, 0.0
    %v209 = vadd.f32 %v207, %v208
    %210 = vadd.xlane.f32.xlu0 %v209
    %v211 = vpop.xlane.xlu0 %210
    %v212 = vrot.slane %v211, 4
    %v213 = vadd.f32 %v211, %v212
    %v214 = vrot.slane %v213, 2
    %v215 = vadd.f32 %v213, %v214
    %v216 = vrot.slane %v215, 1
    %v217 = vadd.f32 %v215, %v216
    %s218 = vtos %v217
    %v219 = vrcp.pop 16.0
    %s220 = vtos %v219
    %s221 = smul.f32 %s218, %s220
    %v222 = vsel %vm68, %v28, 0.0
    %223 = vadd.xlane.f32.xlu0 %v222
    %v224 = vpop.xlane.xlu0 %223
    %v225 = vsel %vm68, %v29, 0.0
    %226 = vadd.xlane.f32.xlu0 %v225
    %v227 = vpop.xlane.xlu0 %226
    %v228 = vrcp.pop %v224
    %v229 = vrcp.pop %v227
    %v230 = vmul.f32 %v28, %v228
    %v231 = vmul.f32 %v29, %v229
    %v232 = vsub.f32 %v66, %v230
    %v233 = vsub.f32 %v67, %v231
    %v234 = vmul.f32 %v232, %v232
    %v235 = vmul.f32 %v233, %v233
    %v236 = vsel %vm68, %v234, 0.0
    %v237 = vsel %vm68, %v235, 0.0
    %v238 = vadd.f32 %v236, %v237
    %239 = vadd.xlane.f32.xlu0 %v238
    %v240 = vpop.xlane.xlu0 %239
    %v241 = vrot.slane %v240, 4
    %v242 = vadd.f32 %v240, %v241
    %v243 = vrot.slane %v242, 2
    %v244 = vadd.f32 %v242, %v243
    %v245 = vrot.slane %v244, 1
    %v246 = vadd.f32 %v244, %v245
    %s247 = vtos %v246
    %v248 = vrcp.pop 256.0
    %s249 = vtos %v248
    %s250 = smul.f32 %s247, %s249
    %s251 = scalar_lea.smem [#allocation5], 0
    %252 = sst [smem:[%s251]] %s178
    %s253 = scalar_lea.smem [#allocation5], 1
    %254 = sst [smem:[%s253]] %s195
    %s255 = scalar_lea.smem [#allocation5], 2
    %256 = sst [smem:[%s255]] %s221
    %s257 = scalar_lea.smem [#allocation5], 3
    %258 = sst [smem:[%s257]] %s250
    %v260 = vsel %vm154, %v142, 0
    %v263 = vsel %vm154, %v147, 0
    %v266 = vsel %vm154, %v30, 0
    %v269 = vsel %vm154, %v31, 0
    %271 = vmatprep.subr.mxu0 0.0
    %272 = vmatpush1.xpose.msra.mxu0 %v266
    %273 = vmatprep.subr.mxu0 0.0
    %274 = vmatpush1.xpose.msra.mxu0 %v269
    %275 = vmatprep.subr.mxu0 0.0
    %276 = vmatpush1.xpose.msra.mxu0 0.0
    %277 = vmatprep.subr.mxu0 0.0
    %278 = vmatpush1.xpose.msra.mxu0 0.0
    %279 = vmatprep.subr.mxu0 0.0
    %280 = vmatpush1.xpose.msra.mxu0 0.0
    %281 = vmatprep.subr.mxu0 0.0
    %282 = vmatpush1.xpose.msra.mxu0 0.0
    %283 = vmatprep.subr.mxu0 0.0
    %284 = vmatpush1.xpose.msra.mxu0 0.0
    %285 = vmatprep.subr.mxu0 0.0
    %286 = vmatpush1.xpose.msra.mxu0 0.0
    %287 = vmatprep.subr.mxu0 0.0
    %288 = vmatpush1.xpose.msra.mxu0 0.0
    %289 = vmatprep.subr.mxu0 0.0
    %290 = vmatpush1.xpose.msra.mxu0 0.0
    %291 = vmatprep.subr.mxu0 0.0
    %292 = vmatpush1.xpose.msra.mxu0 0.0
    %293 = vmatprep.subr.mxu0 0.0
    %294 = vmatpush1.xpose.msra.mxu0 0.0
    %295 = vmatprep.subr.mxu0 0.0
    %296 = vmatpush1.xpose.msra.mxu0 0.0
    %297 = vmatprep.subr.mxu0 0.0
    %298 = vmatpush1.xpose.msra.mxu0 0.0
    %299 = vmatprep.subr.mxu0 0.0
    %300 = vmatpush1.xpose.msra.mxu0 0.0
    %301 = vmatprep.subr.mxu0 0.0
    %302 = vmatpush1.xpose.msra.mxu0 0.0
    %303 = vmatprep.subr.mxu0 0.0
    %304 = vmatpush1.xpose.msra.mxu0 0.0
    %305 = vmatprep.subr.mxu0 0.0
    %306 = vmatpush1.xpose.msra.mxu0 0.0
    %307 = vmatprep.subr.mxu0 0.0
    %308 = vmatpush1.xpose.msra.mxu0 0.0
    %309 = vmatprep.subr.mxu0 0.0
    %310 = vmatpush1.xpose.msra.mxu0 0.0
    %311 = vmatprep.subr.mxu0 0.0
    %312 = vmatpush1.xpose.msra.mxu0 0.0
    %313 = vmatprep.subr.mxu0 0.0
    %314 = vmatpush1.xpose.msra.mxu0 0.0
    %315 = vmatprep.subr.mxu0 0.0
    %316 = vmatpush1.xpose.msra.mxu0 0.0
    %317 = vmatprep.subr.mxu0 0.0
    %318 = vmatpush1.xpose.msra.mxu0 0.0
    %319 = vmatprep.subr.mxu0 0.0
    %320 = vmatpush1.xpose.msra.mxu0 0.0
    %321 = vmatprep.subr.mxu0 0.0
    %322 = vmatpush1.xpose.msra.mxu0 0.0
    %323 = vmatprep.subr.mxu0 0.0
    %324 = vmatpush1.xpose.msra.mxu0 0.0
    %325 = vmatprep.subr.mxu0 0.0
    %326 = vmatpush1.xpose.msra.mxu0 0.0
    %327 = vmatprep.subr.mxu0 0.0
    %328 = vmatpush1.xpose.msra.mxu0 0.0
    %329 = vmatprep.subr.mxu0 0.0
    %330 = vmatpush1.xpose.msra.mxu0 0.0
    %331 = vmatprep.subr.mxu0 0.0
    %332 = vmatpush1.xpose.msra.mxu0 0.0
    %333 = vmatprep.subr.mxu0 0.0
    %334 = vmatpush1.xpose.msra.mxu0 0.0
    %335 = vmatprep.mubr.f32.mxu0 0.0
    %336 = vmatmul.mubr.f32.gmra.mrb[0].mxu0 %v260
    %v337 = vpop.f32.mrb[0].mxu0
    %v338 = vadd.f32 0.0, %v337
    %v339 = vpop.f32.mrb[0].mxu0
    %340 = vmatprep.mubr.f32.mxu0 0.0
    %341 = vmatmul.mubr.f32.gmra.mrb[0].mxu0 %v263
    %v342 = vpop.f32.mrb[0].mxu0
    %v343 = vadd.f32 0.0, %v342
    %v344 = vpop.f32.mrb[0].mxu0
    %345 = vdwg.mxu0
    %vm346 = vcmp.gt.f32.partialorder %v338, 0.0
    %vm347 = vcmp.gt.f32.partialorder %v343, 0.0
    %v348 = vmul.f32 %v338, 0.1
    %v349 = vmul.f32 %v343, 0.1
    %v350 = vsel %vm346, %v338, %v348
    %v351 = vsel %vm347, %v343, %v349
    %352 = vmatprep.subr.mxu0 0.0
    %353 = vmatpush1.msra.mxu0 %v350
    %354 = vmatprep.subr.mxu0 0.0
    %355 = vmatpush1.msra.mxu0 %v351
    %356 = vmatprep.subr.mxu0 0.0
    %357 = vmatpush1.msra.mxu0 0.0
    %358 = vmatprep.subr.mxu0 0.0
    %359 = vmatpush1.msra.mxu0 0.0
    %360 = vmatprep.subr.mxu0 0.0
    %361 = vmatpush1.msra.mxu0 0.0
    %362 = vmatprep.subr.mxu0 0.0
    %363 = vmatpush1.msra.mxu0 0.0
    %364 = vmatprep.subr.mxu0 0.0
    %365 = vmatpush1.msra.mxu0 0.0
    %366 = vmatprep.subr.mxu0 0.0
    %367 = vmatpush1.msra.mxu0 0.0
    %368 = vmatprep.subr.mxu0 0.0
    %369 = vmatpush1.msra.mxu0 0.0
    %370 = vmatprep.subr.mxu0 0.0
    %371 = vmatpush1.msra.mxu0 0.0
    %372 = vmatprep.subr.mxu0 0.0
    %373 = vmatpush1.msra.mxu0 0.0
    %374 = vmatprep.subr.mxu0 0.0
    %375 = vmatpush1.msra.mxu0 0.0
    %376 = vmatprep.subr.mxu0 0.0
    %377 = vmatpush1.msra.mxu0 0.0
    %378 = vmatprep.subr.mxu0 0.0
    %379 = vmatpush1.msra.mxu0 0.0
    %380 = vmatprep.subr.mxu0 0.0
    %381 = vmatpush1.msra.mxu0 0.0
    %382 = vmatprep.subr.mxu0 0.0
    %383 = vmatpush1.msra.mxu0 0.0
    %384 = vmatprep.subr.mxu0 0.0
    %385 = vmatpush1.msra.mxu0 0.0
    %386 = vmatprep.subr.mxu0 0.0
    %387 = vmatpush1.msra.mxu0 0.0
    %388 = vmatprep.subr.mxu0 0.0
    %389 = vmatpush1.msra.mxu0 0.0
    %390 = vmatprep.subr.mxu0 0.0
    %391 = vmatpush1.msra.mxu0 0.0
    %392 = vmatprep.subr.mxu0 0.0
    %393 = vmatpush1.msra.mxu0 0.0
    %394 = vmatprep.subr.mxu0 0.0
    %395 = vmatpush1.msra.mxu0 0.0
    %396 = vmatprep.subr.mxu0 0.0
    %397 = vmatpush1.msra.mxu0 0.0
    %398 = vmatprep.subr.mxu0 0.0
    %399 = vmatpush1.msra.mxu0 0.0
    %400 = vmatprep.subr.mxu0 0.0
    %401 = vmatpush1.msra.mxu0 0.0
    %402 = vmatprep.subr.mxu0 0.0
    %403 = vmatpush1.msra.mxu0 0.0
    %404 = vmatprep.subr.mxu0 0.0
    %405 = vmatpush1.msra.mxu0 0.0
    %406 = vmatprep.subr.mxu0 0.0
    %407 = vmatpush1.msra.mxu0 0.0
    %408 = vmatprep.subr.mxu0 0.0
    %409 = vmatpush1.msra.mxu0 0.0
    %410 = vmatprep.subr.mxu0 0.0
    %411 = vmatpush1.msra.mxu0 0.0
    %412 = vmatprep.subr.mxu0 0.0
    %413 = vmatpush1.msra.mxu0 0.0
    %414 = vmatprep.subr.mxu0 0.0
    %415 = vmatpush1.msra.mxu0 0.0
    %416 = vmatprep.mubr.f32.mxu0 0.0
    %417 = vmatmul.mubr.f32.gmra.mrb[0].mxu0 %v70
    %v418 = vpop.f32.mrb[0].mxu0
    %v419 = vadd.f32 0.0, %v418
    %v420 = vpop.f32.mrb[0].mxu0
    %421 = vmatprep.mubr.f32.mxu0 0.0
    %422 = vmatmul.mubr.f32.gmra.mrb[0].mxu0 %v73
    %v423 = vpop.f32.mrb[0].mxu0
    %v424 = vadd.f32 0.0, %v423
    %v425 = vpop.f32.mrb[0].mxu0
    %426 = vdwg.mxu0
    %v428 = vsel %vm68, %v419, 0
    %v431 = vsel %vm68, %v424, 0
    %v434 = vsel %vm68, %v32, 0
    %v437 = vsel %vm68, %v33, 0
    %439 = vmatprep.subr.mxu0 0.0
    %440 = vmatpush1.xpose.msra.mxu0 %v434
    %441 = vmatprep.subr.mxu0 0.0
    %442 = vmatpush1.xpose.msra.mxu0 %v437
    %443 = vmatprep.subr.mxu0 0.0
    %444 = vmatpush1.xpose.msra.mxu0 0.0
    %445 = vmatprep.subr.mxu0 0.0
    %446 = vmatpush1.xpose.msra.mxu0 0.0
    %447 = vmatprep.subr.mxu0 0.0
    %448 = vmatpush1.xpose.msra.mxu0 0.0
    %449 = vmatprep.subr.mxu0 0.0
    %450 = vmatpush1.xpose.msra.mxu0 0.0
    %451 = vmatprep.subr.mxu0 0.0
    %452 = vmatpush1.xpose.msra.mxu0 0.0
    %453 = vmatprep.subr.mxu0 0.0
    %454 = vmatpush1.xpose.msra.mxu0 0.0
    %455 = vmatprep.subr.mxu0 0.0
    %456 = vmatpush1.xpose.msra.mxu0 0.0
    %457 = vmatprep.subr.mxu0 0.0
    %458 = vmatpush1.xpose.msra.mxu0 0.0
    %459 = vmatprep.subr.mxu0 0.0
    %460 = vmatpush1.xpose.msra.mxu0 0.0
    %461 = vmatprep.subr.mxu0 0.0
    %462 = vmatpush1.xpose.msra.mxu0 0.0
    %463 = vmatprep.subr.mxu0 0.0
    %464 = vmatpush1.xpose.msra.mxu0 0.0
    %465 = vmatprep.subr.mxu0 0.0
    %466 = vmatpush1.xpose.msra.mxu0 0.0
    %467 = vmatprep.subr.mxu0 0.0
    %468 = vmatpush1.xpose.msra.mxu0 0.0
    %469 = vmatprep.subr.mxu0 0.0
    %470 = vmatpush1.xpose.msra.mxu0 0.0
    %471 = vmatprep.subr.mxu0 0.0
    %472 = vmatpush1.xpose.msra.mxu0 0.0
    %473 = vmatprep.subr.mxu0 0.0
    %474 = vmatpush1.xpose.msra.mxu0 0.0
    %475 = vmatprep.subr.mxu0 0.0
    %476 = vmatpush1.xpose.msra.mxu0 0.0
    %477 = vmatprep.subr.mxu0 0.0
    %478 = vmatpush1.xpose.msra.mxu0 0.0
    %479 = vmatprep.subr.mxu0 0.0
    %480 = vmatpush1.xpose.msra.mxu0 0.0
    %481 = vmatprep.subr.mxu0 0.0
    %482 = vmatpush1.xpose.msra.mxu0 0.0
    %483 = vmatprep.subr.mxu0 0.0
    %484 = vmatpush1.xpose.msra.mxu0 0.0
    %485 = vmatprep.subr.mxu0 0.0
    %486 = vmatpush1.xpose.msra.mxu0 0.0
    %487 = vmatprep.subr.mxu0 0.0
    %488 = vmatpush1.xpose.msra.mxu0 0.0
    %489 = vmatprep.subr.mxu0 0.0
    %490 = vmatpush1.xpose.msra.mxu0 0.0
    %491 = vmatprep.subr.mxu0 0.0
    %492 = vmatpush1.xpose.msra.mxu0 0.0
    %493 = vmatprep.subr.mxu0 0.0
    %494 = vmatpush1.xpose.msra.mxu0 0.0
    %495 = vmatprep.subr.mxu0 0.0
    %496 = vmatpush1.xpose.msra.mxu0 0.0
    %497 = vmatprep.subr.mxu0 0.0
    %498 = vmatpush1.xpose.msra.mxu0 0.0
    %499 = vmatprep.subr.mxu0 0.0
    %500 = vmatpush1.xpose.msra.mxu0 0.0
    %501 = vmatprep.subr.mxu0 0.0
    %502 = vmatpush1.xpose.msra.mxu0 0.0
    %503 = vmatprep.mubr.f32.mxu0 0.0
    %504 = vmatmul.mubr.f32.gmra.mrb[0].mxu0 %v428
    %v505 = vpop.f32.mrb[0].mxu0
    %v506 = vadd.f32 0.0, %v505
    %v507 = vpop.f32.mrb[0].mxu0
    %508 = vmatprep.mubr.f32.mxu0 0.0
    %509 = vmatmul.mubr.f32.gmra.mrb[0].mxu0 %v431
    %v510 = vpop.f32.mrb[0].mxu0
    %v511 = vadd.f32 0.0, %v510
    %v512 = vpop.f32.mrb[0].mxu0
    %513 = vdwg.mxu0
    %vm514 = vcmp.gt.f32.partialorder %v506, 0.0
    %vm515 = vcmp.gt.f32.partialorder %v511, 0.0
    %v516 = vmul.f32 %v506, 0.1
    %v517 = vmul.f32 %v511, 0.1
    %v518 = vsel %vm514, %v506, %v516
    %v519 = vsel %vm515, %v511, %v517
    %520 = vst.msk [vmem:[#allocation2] sm:$0xff] %vm68, %v518
    %521 = vst.msk [vmem:[#allocation2 + $0x8] sm:$0xff] %vm68, %v519
    // Predicated region
    $region22: #{tpu_custom_call.1} parent=1 // pred_check
      _
    $region23: #{tpu_custom_call.1} parent=1 // pred_check_branch
      %523 = sbr.rel (0) target = $region25
    $region24: #{tpu_custom_call.1} parent=1 // pred_region
      %s525 = ssub.s32 256, 256
      %526 = vsyncadd [#allocation3], %s525
      %s527 = sshll.u32 [#allocation2], 4
      %s528 = int_to_ptr.vmem [resolvable:$true] %s527
      %533 = dma.vmem_to_hbm [thread:$0]  %s528, 256, %s5, [#allocation3], 128, 128, 8
    $region25: #{tpu_custom_call.1} parent=1 // pred_fallthru
      _
    // Predicated region
    $region26: #{tpu_custom_call.1} parent=1 // pred_check
      _
    $region27: #{tpu_custom_call.1} parent=1 // pred_check_branch
      %535 = sbr.rel (0) target = $region29
    $region28: #{tpu_custom_call.1} parent=1 // pred_region
      %s537 = ssub.s32 16, 16
      %538 = vsyncadd [#allocation4], %s537
      %541 = dma.smem_to_hbm [#allocation5], 16, %s6, [#allocation4]
    $region29: #{tpu_custom_call.1} parent=1 // pred_fallthru
      _
    // Predicated region
    $region30: #{tpu_custom_call.1} parent=1 // pred_check
      _
    $region31: #{tpu_custom_call.1} parent=1 // pred_check_branch
      %543 = sbr.rel (0) target = $region33
    $region32: #{tpu_custom_call.1} parent=1 // pred_region
      %544 = dma.done [#allocation3], 256
    $region33: #{tpu_custom_call.1} parent=1 // pred_fallthru
      _
    // Predicated region
    $region34: #{tpu_custom_call.1} parent=1 // pred_check
      _
    $region35: #{tpu_custom_call.1} parent=1 // pred_check_branch
      %546 = sbr.rel (0) target = $region37
    $region36: #{tpu_custom_call.1} parent=1 // pred_region
      %547 = dma.done [#allocation4], 16
    $region37: #{tpu_custom_call.1} parent=1 // pred_fallthru
      _
    %548 = sfence
    %549 = vsyncpa [#allocation3], 1
    %550 = vsyncpa [#allocation4], 1

</llo_original>
